<compile_context>
chip_gen: v5e
topology: v5e:2x2
jax: 0.10.0
libtpu: 0.0.40
codegen_flags: <defaults>
</compile_context>

<pallas_src>
import functools

import jax
import jax.numpy as jnp
from jax.experimental import pallas as pl
from jax.experimental.pallas import tpu as pltpu


def _spec_augment_kernel(t_start_ref, t_end_ref, f_start_ref, f_end_ref,
                         x_ref, o_ref, *, time_masks, freq_masks, time_tile):
    # x_ref: (Bb, F, Tt) VMEM tile.
    _, F, Tt = x_ref.shape
    t_off = pl.program_id(1) * time_tile  # global time offset of this tile

    cut = None  # boolean "zero this element" mask, built from 1-D iotas only

    if time_masks > 0:
        # (1, 1, Tt) global time indices — never materialize an (F, Tt) iota.
        time_idx = jax.lax.broadcasted_iota(jnp.int32, (1, 1, Tt), 2) + t_off
        t_cut = None
        for m in range(time_masks):
            s = t_start_ref[m]
            e = t_end_ref[m]
            seg = (time_idx >= s) & (time_idx < e)
            t_cut = seg if t_cut is None else (t_cut | seg)
        cut = t_cut

    if freq_masks > 0:
        # (1, F, 1) frequency indices (F is never tiled, local == global).
        freq_idx = jax.lax.broadcasted_iota(jnp.int32, (1, F, 1), 1)
        f_cut = None
        for m in range(freq_masks):
            s = f_start_ref[m]
            e = f_end_ref[m]
            seg = (freq_idx >= s) & (freq_idx < e)
            f_cut = seg if f_cut is None else (f_cut | seg)
        cut = f_cut if cut is None else (cut | f_cut)

    x = x_ref[...]
    if cut is None:
        o_ref[...] = x
    else:
        # Single fused select over the tile (broadcasts (1,F,Tt)/(1,1,Tt)).
        o_ref[...] = jnp.where(cut, jnp.zeros((), x.dtype), x)


def _sample_mask_bounds(key, num_masks, mask_param, axis_size):
    """Replicates torchaudio mask_along_axis start/end sampling."""
    if num_masks == 0:
        # Dummy (unused) masks so SMEM prefetch arrays are non-empty.
        return (jnp.zeros((1,), jnp.int32), jnp.zeros((1,), jnp.int32))
    k1, k2 = jax.random.split(key)
    u_val = jax.random.uniform(k1, (num_masks,))
    u_min = jax.random.uniform(k2, (num_masks,))
    value = u_val * mask_param                       # segment length (float)
    min_value = u_min * (axis_size - value)          # segment start (float)
    start = jnp.floor(min_value).astype(jnp.int32)
    end = jnp.floor(min_value + value).astype(jnp.int32)
    return start, end


def _choose_tiles(B, F, Tp, dtype, *, buf_budget_bytes=4 * 1024 * 1024,
                  max_time_tile=8192):
    """Pick (batch_block, time_block) for a padded time extent Tp (128-mult).

    * Time tile: the largest 128-multiple within a ~4 MiB per-buffer budget
      (capped at max_time_tile).  The grid uses cdiv, so tt does NOT have to
      divide Tp — no collapse to 128-wide tiles on awkward T.
    * Batch fold: batch rows are folded into the tile until the per-buffer
      budget is hit (even when the time axis is tiled), to amortize the
      ~0.35 us per-grid-step overhead.
    * v7x megacore: if the whole call would be a single grid step, halve the
      batch fold so both TensorCores get work.
    """
    itemsize = jnp.dtype(dtype).itemsize
    budget_t = max(128, ((buf_budget_bytes // (itemsize * max(F, 1))) // 128) * 128)
    tt = min(Tp, max_time_tile, budget_t)
    grid_t = pl.cdiv(Tp, tt)

    tile_bytes = F * tt * itemsize
    bb = max(1, min(B, buf_budget_bytes // max(tile_bytes, 1)))
    if grid_t == 1 and bb >= B and B >= 2:
        bb = B // 2          # keep >=2 grid steps so both v7x TCs get work
    while B % bb != 0:
        bb -= 1
    return bb, tt


def spec_augment(x, key, *, freq_masks=0, time_masks=0,
                 freq_width=10, time_width=10, training=True,
                 donate_input=False):
    """Apply SpecAugment to spectrogram x of shape (B, F, T).

    Set donate_input=True only when the caller actually donates x (e.g. jit
    with donate_argnums); otherwise XLA would insert a defensive copy and the
    alias would add HBM traffic instead of saving it.
    """
    if not training or (freq_masks == 0 and time_masks == 0):
        return x

    B, F, T = x.shape
    k_time, k_freq = jax.random.split(key)
    t_start, t_end = _sample_mask_bounds(k_time, time_masks, time_width, T)
    f_start, f_end = _sample_mask_bounds(k_freq, freq_masks, freq_width, F)

    # Lane-dense output: pad T up to a multiple of 128 (slice back at the end).
    Tp = ((T + 127) // 128) * 128
    xp = x if Tp == T else jnp.pad(x, ((0, 0), (0, 0), (0, Tp - T)))

    bb, tt = _choose_tiles(B, F, Tp, x.dtype)
    grid = (B // bb, pl.cdiv(Tp, tt))

    kernel = functools.partial(_spec_augment_kernel,
                               time_masks=time_masks, freq_masks=freq_masks,
                               time_tile=tt)

    itemsize = jnp.dtype(x.dtype).itemsize
    cost = pl.CostEstimate(
        flops=B * F * Tp,                       # one select per element
        transcendentals=0,
        bytes_accessed=2 * B * F * Tp * itemsize)

    grid_spec = pltpu.PrefetchScalarGridSpec(
        num_scalar_prefetch=4,          # t_start, t_end, f_start, f_end → SMEM
        grid=grid,
        in_specs=[
            pl.BlockSpec((bb, F, tt), lambda b, j, *prefetch: (b, 0, j)),
        ],
        out_specs=pl.BlockSpec((bb, F, tt), lambda b, j, *prefetch: (b, 0, j)),
    )

    # x is operand index 4 at the pallas_call (after the 4 scalar-prefetch
    # args).  Every output element is written by the grid, so in-place reuse
    # is safe — but only beneficial when the buffer is genuinely donated.
    alias = {4: 0} if (donate_input and Tp == T) else {}

    out = pl.pallas_call(
        kernel,
        out_shape=jax.ShapeDtypeStruct((B, F, Tp), x.dtype),
        grid_spec=grid_spec,
        input_output_aliases=alias,
        cost_estimate=cost,
        compiler_params=pltpu.CompilerParams(
            dimension_semantics=("parallel", "parallel"),
            vmem_limit_bytes=48 * 1024 * 1024),
    )(t_start, t_end, f_start, f_end, xp)

    return out if Tp == T else out[:, :, :T]


def _reference(x, key, *, freq_masks, time_masks, freq_width, time_width):
    """Plain-JAX reference using the same sampled bounds."""
    B, F, T = x.shape
    k_time, k_freq = jax.random.split(key)
    t_start, t_end = _sample_mask_bounds(k_time, time_masks, time_width, T)
    f_start, f_end = _sample_mask_bounds(k_freq, freq_masks, freq_width, F)
    t_idx = jnp.arange(T)[None, None, :]
    f_idx = jnp.arange(F)[None, :, None]
    ref = x
    for m in range(time_masks):
        ref = jnp.where((t_idx >= t_start[m]) & (t_idx < t_end[m]), 0.0, ref)
    for m in range(freq_masks):
        ref = jnp.where((f_idx >= f_start[m]) & (f_idx < f_end[m]), 0.0, ref)
    return ref


if __name__ == "__main__":
    key = jax.random.PRNGKey(0)
    k_x1, k_m1, k_x2, k_m2 = jax.random.split(key, 4)

    # Case 1: small, non-128-aligned spectrogram (exercises the pad-to-128
    # lane-dense path and the batch-folded grid).
    B, F, T = 2, 16, 100
    x1 = jax.random.normal(k_x1, (B, F, T), dtype=jnp.float32)
    out1 = spec_augment(x1, k_m1, freq_masks=2, time_masks=2,
                        freq_width=10, time_width=10, training=True)
    out1 = jax.block_until_ready(out1)
    ref1 = _reference(x1, k_m1, freq_masks=2, time_masks=2,
                      freq_width=10, time_width=10)
    assert out1.shape == x1.shape
    assert jnp.allclose(out1, ref1), "mismatch vs reference (small/padded case)"

    # Case 2: lane-aligned spectrogram (128-multiple T, typical F=80),
    # exercises the global-time-offset logic and the tiled grid.
    B2, F2, T2 = 2, 80, 768
    x2 = jax.random.normal(k_x2, (B2, F2, T2), dtype=jnp.float32)
    out2 = spec_augment(x2, k_m2, freq_masks=2, time_masks=3,
                        freq_width=27, time_width=100, training=True)
    out2 = jax.block_until_ready(out2)
    ref2 = _reference(x2, k_m2, freq_masks=2, time_masks=3,
                      freq_width=27, time_width=100)
    assert jnp.allclose(out2, ref2), "mismatch vs reference (aligned case)"

    # Eval mode is a no-op, as in the PyTorch module.
    assert spec_augment(x1, k_m1, freq_masks=2, time_masks=2,
                        training=False) is x1

    print("KERNEL_OK")
</pallas_src>

<mosaic_0001>
module attributes {stable_mosaic.version = 11 : i64} {
  func.func @_spec_augment_kernel(%arg0: i32, %arg1: i32, %arg2: memref<2xi32, #tpu.memory_space<smem>>, %arg3: memref<2xi32, #tpu.memory_space<smem>>, %arg4: memref<2xi32, #tpu.memory_space<smem>>, %arg5: memref<2xi32, #tpu.memory_space<smem>>, %arg6: memref<1x16x128xf32, #tpu.memory_space<vmem>>, %arg7: memref<1x16x128xf32, #tpu.memory_space<vmem>>) attributes {dimension_semantics = [#tpu.dimension_semantics<parallel>, #tpu.dimension_semantics<parallel>], iteration_bounds = array<i64: 2, 1>, scalar_prefetch = 4 : i64, scratch_operands = 0 : i64, tpu.core_type = #tpu.core_type<tc>, window_params = [{transform_indices = @transform_0, window_bounds = array<i64: 1, 16, 128>}, {transform_indices = @transform_1, window_bounds = array<i64: 1, 16, 128>}]} {
    %c128_i32 = arith.constant 128 : i32
    %0 = arith.muli %arg1, %c128_i32 : i32
    %1 = tpu.iota {dimensions = array<i32: 2>} : vector<1x1x128xi32>
    %2 = vector.broadcast %0 : i32 to vector<1x1x128xi32>
    %3 = arith.addi %1, %2 : vector<1x1x128xi32>
    %c0 = arith.constant 0 : index
    %4 = memref.load %arg2[%c0] : memref<2xi32, #tpu.memory_space<smem>>
    %c0_0 = arith.constant 0 : index
    %5 = memref.load %arg3[%c0_0] : memref<2xi32, #tpu.memory_space<smem>>
    %6 = vector.broadcast %4 : i32 to vector<1x1x128xi32>
    %7 = arith.cmpi sge, %3, %6 : vector<1x1x128xi32>
    %8 = vector.broadcast %5 : i32 to vector<1x1x128xi32>
    %9 = arith.cmpi slt, %3, %8 : vector<1x1x128xi32>
    %10 = arith.andi %7, %9 : vector<1x1x128xi1>
    %c1 = arith.constant 1 : index
    %11 = memref.load %arg2[%c1] : memref<2xi32, #tpu.memory_space<smem>>
    %c1_1 = arith.constant 1 : index
    %12 = memref.load %arg3[%c1_1] : memref<2xi32, #tpu.memory_space<smem>>
    %13 = vector.broadcast %11 : i32 to vector<1x1x128xi32>
    %14 = arith.cmpi sge, %3, %13 : vector<1x1x128xi32>
    %15 = vector.broadcast %12 : i32 to vector<1x1x128xi32>
    %16 = arith.cmpi slt, %3, %15 : vector<1x1x128xi32>
    %17 = arith.andi %14, %16 : vector<1x1x128xi1>
    %18 = arith.ori %10, %17 : vector<1x1x128xi1>
    %19 = tpu.iota {dimensions = array<i32: 1>} : vector<1x16x1xi32>
    %c0_2 = arith.constant 0 : index
    %20 = memref.load %arg4[%c0_2] : memref<2xi32, #tpu.memory_space<smem>>
    %c0_3 = arith.constant 0 : index
    %21 = memref.load %arg5[%c0_3] : memref<2xi32, #tpu.memory_space<smem>>
    %22 = vector.broadcast %20 : i32 to vector<1x16x1xi32>
    %23 = arith.cmpi sge, %19, %22 : vector<1x16x1xi32>
    %24 = vector.broadcast %21 : i32 to vector<1x16x1xi32>
    %25 = arith.cmpi slt, %19, %24 : vector<1x16x1xi32>
    %26 = arith.andi %23, %25 : vector<1x16x1xi1>
    %c1_4 = arith.constant 1 : index
    %27 = memref.load %arg4[%c1_4] : memref<2xi32, #tpu.memory_space<smem>>
    %c1_5 = arith.constant 1 : index
    %28 = memref.load %arg5[%c1_5] : memref<2xi32, #tpu.memory_space<smem>>
    %29 = vector.broadcast %27 : i32 to vector<1x16x1xi32>
    %30 = arith.cmpi sge, %19, %29 : vector<1x16x1xi32>
    %31 = vector.broadcast %28 : i32 to vector<1x16x1xi32>
    %32 = arith.cmpi slt, %19, %31 : vector<1x16x1xi32>
    %33 = arith.andi %30, %32 : vector<1x16x1xi1>
    %34 = arith.ori %26, %33 : vector<1x16x1xi1>
    %35 = vector.broadcast %18 : vector<1x1x128xi1> to vector<1x16x128xi1>
    %36 = vector.broadcast %34 : vector<1x16x1xi1> to vector<1x16x128xi1>
    %37 = arith.ori %35, %36 : vector<1x16x128xi1>
    %c0_6 = arith.constant 0 : index
    %c0_7 = arith.constant 0 : index
    %c0_8 = arith.constant 0 : index
    %38 = vector.load %arg6[%c0_6, %c0_7, %c0_8] : memref<1x16x128xf32, #tpu.memory_space<vmem>>, vector<1x16x128xf32>
    %cst = arith.constant 0.000000e+00 : f32
    %39 = vector.broadcast %cst : f32 to vector<1x16x128xf32>
    %40 = arith.select %37, %39, %38 : vector<1x16x128xi1>, vector<1x16x128xf32>
    %c0_9 = arith.constant 0 : index
    %c0_10 = arith.constant 0 : index
    %c0_11 = arith.constant 0 : index
    %41 = vector.load %arg7[%c0_9, %c0_10, %c0_11] : memref<1x16x128xf32, #tpu.memory_space<vmem>>, vector<1x16x128xf32>
    tpu.vector_store %arg7[%c0_9, %c0_10, %c0_11], %40 {strides = array<i32>} : memref<1x16x128xf32, #tpu.memory_space<vmem>>, vector<1x16x128xf32>,
    return
  }
  func.func @transform_0(%arg0: i32, %arg1: i32, %arg2: memref<2xi32, #tpu.memory_space<smem>>, %arg3: memref<2xi32, #tpu.memory_space<smem>>, %arg4: memref<2xi32, #tpu.memory_space<smem>>, %arg5: memref<2xi32, #tpu.memory_space<smem>>) -> (i32, i32, i32) {
    %c0_i32 = arith.constant 0 : i32
    %c0_i32_0 = arith.constant 0 : i32
    return %arg0, %c0_i32, %arg1 : i32, i32, i32
  }
  func.func @transform_1(%arg0: i32, %arg1: i32, %arg2: memref<2xi32, #tpu.memory_space<smem>>, %arg3: memref<2xi32, #tpu.memory_space<smem>>, %arg4: memref<2xi32, #tpu.memory_space<smem>>, %arg5: memref<2xi32, #tpu.memory_space<smem>>) -> (i32, i32, i32) {
    %c0_i32 = arith.constant 0 : i32
    %c0_i32_0 = arith.constant 0 : i32
    return %arg0, %c0_i32, %arg1 : i32, i32, i32
  }
}

</mosaic_0001>

<llo_original>
// kernel: tpu_custom_call.1
$region0: #{tpu_custom_call.1}
  #allocation0 [shape = 'u32[]', space=smem, size = 0x4, offset = 0x4, fixed_abs, tag = 'smem constant byte address 0x4 - core index']
  #allocation1 [shape = 'u32[72,128]{1,0:T(1,128)}', space=vmem, size = 0x9000, scoped, tag = 'internal scratch']
  #allocation2 [shape = 's32[1]{0}', space=sflag, size = 0x4, scoped, tag = 'scoped memory for tpu_custom_call.1']
  #allocation3 [shape = 'u8[512]{0}', space=smem, size = 0x200, scoped, tag = 'prefetched SMEM operand 0']
  #allocation4 [shape = 'u8[512]{0}', space=smem, size = 0x200, scoped, tag = 'prefetched SMEM operand 1']
  #allocation5 [shape = 'u8[512]{0}', space=smem, size = 0x200, scoped, tag = 'prefetched SMEM operand 2']
  #allocation6 [shape = 'u8[512]{0}', space=smem, size = 0x200, scoped, tag = 'prefetched SMEM operand 3']
  %s0 = inlined_call_operand.hbm [shape: s32[2], index: 0, kind: input, shape index: {}]
  %s1 = inlined_call_operand.hbm [shape: s32[2], index: 1, kind: input, shape index: {}]
  %s2 = inlined_call_operand.vmem [shape: s32[2], index: 2, kind: input, shape index: {}]
  %s3 = inlined_call_operand.vmem [shape: s32[2], index: 3, kind: input, shape index: {}]
  %s4 = inlined_call_operand.hbm [shape: f32[2,16,128], index: 4, kind: input, shape index: {}]
  %s5 = inlined_call_operand.hbm [shape: f32[2,16,128], index: 5, kind: output, shape index: {}]
  %s6 = sld [smem:[#allocation0]]
  $region41: #{tpu_custom_call.1} parent=0
    _
  %s8 = ssub.s32 1, %s6
  %s9 = scalar_select 0, %s8, %s6
  %s11 = sshll.u32 %s0, 4
  %s12 = int_to_ptr.hbm [resolvable:$true] %s11
  %14 = dma.hbm_to_smem %s12, 16, [#allocation3], [#allocation2]
  %s16 = sshll.u32 %s1, 4
  %s17 = int_to_ptr.hbm [resolvable:$true] %s16
  %19 = dma.hbm_to_smem %s17, 16, [#allocation4], [#allocation2]
  %s21 = sshll.u32 %s2, 4
  %s22 = int_to_ptr.vmem [resolvable:$true] %s21
  %24 = dma.vmem_to_smem %s22, 16, [#allocation5], [#allocation2]
  %s26 = sshll.u32 %s3, 4
  %s27 = int_to_ptr.vmem [resolvable:$true] %s26
  %29 = dma.vmem_to_smem %s27, 16, [#allocation6], [#allocation2]
  %31 = dma.done [#allocation2], 64
  %32 = sfence
  $region1: #{tpu_custom_call.1} parent=0
    #allocation7 [shape = 'u8[16384]{0}', space=vmem, size = 0x4000, scoped, tag = 'input window, operand 4']
    #allocation8 [shape = 's32[2]{0}', space=sflag, size = 0x8, scoped, tag = 'scoped memory for tpu_custom_call.1']
    #allocation9 [shape = 's32[2]{0}', space=sflag, size = 0x8, scoped, tag = 'scoped memory for tpu_custom_call.1']
    #allocation10 [shape = 'u8[16384]{0}', space=vmem, size = 0x4000, scoped, tag = 'output window, operand 0']
    %33 = vsyncpa [#allocation8], 0
    %s34 = scalar_lea.sflag [#allocation8], 1
    %35 = vsyncpa %s34, 0
    %36 = vsyncpa [#allocation9], 0
    %s37 = scalar_lea.sflag [#allocation9], 1
    %38 = vsyncpa %s37, 0
    loop: start=0, step=1, limit=4
    $region2: #{tpu_custom_call.1} parent=1 // loop_pre_header
      _
    $region3: #{tpu_custom_call.1} parent=1 // loop_header
      %s40 = sphi 0, %s44
      %p41 = scmp.ge.s32.totalorder %s40, 4
      %s47 = sphi 0, %s59
      %s48 = sphi 0, %s55
      %s49 = sphi 0, %s47
      %s50 = sphi 0, %s48
      %s51 = sphi 0, %s49
      %s52 = sphi 0, %s50
      %s64 = sphi 0, %s66
      %s67 = sphi 0, %s64
      %s68 = sphi 0, %s67
      %s84 = sphi 0, %s68
      %s92 = sphi 0, %s94
      %s95 = sphi 0, %s92
      %s96 = sphi 0, %s95
      %s112 = sphi 0, %s96
    $region4: #{tpu_custom_call.1} parent=1 // loop_header_branch
      %43 = sbr.rel (%p41) target = $region8
    $region5: #{tpu_custom_call.1} parent=1 // loop_body
      %s45 = ssub.s32 %s40, 1
      %s46 = ssub.s32 %s40, 2
      %s53 = sadd.s32 1, %s48
      %p54 = scmp.ge.s32.totalorder %s53, 1
      %s55 = scalar_select %p54, 0, %s53
      %s56 = sadd.s32 1, %s47
      %s57 = scalar_select %p54, %s56, %s47
      %p58 = scmp.ge.s32.totalorder %s57, 2
      %s59 = scalar_select %p58, 0, %s57
      %s60 = ssub.s32 %s47, %s59
      %s61 = ssub.s32 %s48, %s55
      %s62 = sor.u32 %s60, %s61
      %p63 = scmp.eq.s32.totalorder %s62, 0
      %s65 = sadd.s32 %s64, 1
      %s66 = scalar_select %p63, %s64, %s65
      %p69 = pneg %p63
      %p70 = scmp.eq.s32.totalorder %s40, 1
      %p71 = por %p69, %p70
      %p72 = scmp.ne.s32.totalorder %s64, %s67
      %p73 = scmp.eq.s32.totalorder %s40, 0
      %p74 = por %p72, %p73
      %p75 = scmp.ne.s32.totalorder %s64, %s67
      %p76 = scmp.eq.s32.totalorder %s45, 1
      %p77 = por %p75, %p76
      %p78 = scmp.ne.s32.totalorder %s67, %s68
      %p79 = scmp.eq.s32.totalorder %s45, 0
      %p80 = por %p78, %p79
      %p81 = scmp.ne.s32.totalorder %s67, %s68
      %p82 = scmp.eq.s32.totalorder %s46, 1
      %p83 = por %p81, %p82
      %p85 = scmp.ne.s32.totalorder %s68, %s84
      %p86 = scmp.eq.s32.totalorder %s46, 0
      %p87 = por %p85, %p86
      %s88 = ssub.s32 %s47, %s59
      %s89 = ssub.s32 %s48, %s55
      %s90 = sor.u32 %s88, %s89
      %p91 = scmp.eq.s32.totalorder %s90, 0
      %s93 = sadd.s32 %s92, 1
      %s94 = scalar_select %p91, %s92, %s93
      %p97 = pneg %p91
      %p98 = scmp.eq.s32.totalorder %s40, 1
      %p99 = por %p97, %p98
      %p100 = scmp.ne.s32.totalorder %s92, %s95
      %p101 = scmp.eq.s32.totalorder %s40, 0
      %p102 = por %p100, %p101
      %p103 = scmp.ne.s32.totalorder %s92, %s95
      %p104 = scmp.eq.s32.totalorder %s45, 1
      %p105 = por %p103, %p104
      %p106 = scmp.ne.s32.totalorder %s95, %s96
      %p107 = scmp.eq.s32.totalorder %s45, 0
      %p108 = por %p106, %p107
      %p109 = scmp.ne.s32.totalorder %s95, %s96
      %p110 = scmp.eq.s32.totalorder %s46, 1
      %p111 = por %p109, %p110
      %p113 = scmp.ne.s32.totalorder %s96, %s112
      %p114 = scmp.eq.s32.totalorder %s46, 0
      %p115 = por %p113, %p114
      %p116 = scmp.le.s32.totalorder 1, %s40
      %p117 = scmp.lt.s32.totalorder %s40, 3
      %p118 = pnand %p116, %p117
      %p119 = pneg %p118
      // Predicated region
      $region9: #{tpu_custom_call.1} parent=5 // pred_check
        _
      $region10: #{tpu_custom_call.1} parent=5 // pred_check_branch
        %121 = sbr.rel (%p118) target = $region12
      $region11: #{tpu_custom_call.1} parent=5 // pred_region
        %s122 = ssub.s32 %s40, 1
      $region12: #{tpu_custom_call.1} parent=5 // pred_fallthru
        _
      %p123 = scmp.lt.s32.totalorder %s40, 2
      // Predicated region
      $region13: #{tpu_custom_call.1} parent=5 // pred_check
        %p124 = pneg %p123
      $region14: #{tpu_custom_call.1} parent=5 // pred_check_branch
        %126 = sbr.rel (%p124) target = $region16
      $region15: #{tpu_custom_call.1} parent=5 // pred_region
        // Predicated region
        $region17: #{tpu_custom_call.1} parent=15 // pred_check
          %p127 = pneg %p74
        $region18: #{tpu_custom_call.1} parent=15 // pred_check_branch
          %129 = sbr.rel (%p127) target = $region20
        $region19: #{tpu_custom_call.1} parent=15 // pred_region
          %s130 = sand.u32 %s64, 1
          %s131 = scalar_lea.sflag [#allocation8], %s130
          %s132 = sand.u32 %s64, 1
          %s133 = smul.addr %s132, 16
          %s134 = scalar_lea.vmem [#allocation7], %s133
          %136 = vsyncadd %s131, 0
          %s137 = smul.addr %s47, 2
          %s138 = sadd.s32 %s48, %s137
          %s139 = smul.addr %s138, 8
          %s140 = scalar_lea.hbm %s4, %s139
          %s141 = sshll.u32 %s140, 4
          %s142 = int_to_ptr.hbm [resolvable:$true] %s141
          %s143 = sshll.u32 %s134, 4
          %s144 = int_to_ptr.vmem [resolvable:$true] %s143
          %149 = dma.hbm_to_vmem [thread:$0]  %s142, 256, %s144, %s131, 128, 128, 8
        $region20: #{tpu_custom_call.1} parent=15 // pred_fallthru
          _
      $region16: #{tpu_custom_call.1} parent=5 // pred_fallthru
        _
      %p150 = scmp.le.s32.totalorder 1, %s40
      %p151 = scmp.lt.s32.totalorder %s40, 3
      %p152 = pnand %p150, %p151
      %p153 = pneg %p152
      // Predicated region
      $region21: #{tpu_custom_call.1} parent=5 // pred_check
        _
      $region22: #{tpu_custom_call.1} parent=5 // pred_check_branch
        %155 = sbr.rel (%p152) target = $region24
      $region23: #{tpu_custom_call.1} parent=5 // pred_region
        %s156 = ssub.s32 %s40, 1
        %s157 = sand.u32 %s67, 1
        %s158 = scalar_lea.sflag [#allocation8], %s157
        %s159 = sand.u32 %s67, 1
        %s160 = smul.addr %s159, 16
        %s161 = scalar_lea.vmem [#allocation7], %s160
        // Predicated region
        $region25: #{tpu_custom_call.1} parent=23 // pred_check
          %p162 = pneg %p80
        $region26: #{tpu_custom_call.1} parent=23 // pred_check_branch
          %164 = sbr.rel (%p162) target = $region28
        $region27: #{tpu_custom_call.1} parent=23 // pred_region
          %166 = dma.done %s158, 256
        $region28: #{tpu_custom_call.1} parent=23 // pred_fallthru
          _
        %s167 = sand.u32 %s67, 1
        %s168 = scalar_lea.sflag [#allocation8], %s167
        %s169 = sand.u32 %s67, 1
        %s170 = smul.addr %s169, 16
        %s171 = scalar_lea.vmem [#allocation7], %s170
        %p172 = pneg %p80
        %p173 = pneg %p77
        %p174 = pneg %p108
        %p175 = pneg %p105
        %s176 = sand.u32 %s95, 1
        %s177 = scalar_lea.sflag [#allocation9], %s176
        %s178 = sand.u32 %s95, 1
        %s179 = smul.addr %s178, 16
        %s180 = scalar_lea.vmem [#allocation10], %s179
        %s181 = smul.u32 %s50, 128
        %v182 = vlaneseq
        %v183 = vand.u32 %v182, 127
        %v184 = vstv %s181
        %v185 = vadd.s32 %v183, %v184
        %s186 = sld [smem:[#allocation3]]
        %s187 = sld [smem:[#allocation4]]
        %v188 = vstv %s186
        %vm189 = vcmp.ge.s32.totalorder %v185, %v188
        %v190 = vstv %s187
        %vm191 = vcmp.lt.s32.totalorder %v185, %v190
        %vm192 = vmand %vm189, %vm191
        %s193 = sld [smem:[#allocation3 + $0x1]]
        %s194 = sld [smem:[#allocation4 + $0x1]]
        %v195 = vstv %s193
        %vm196 = vcmp.ge.s32.totalorder %v185, %v195
        %v197 = vstv %s194
        %vm198 = vcmp.lt.s32.totalorder %v185, %v197
        %vm199 = vmand %vm196, %vm198
        %vm200 = vmor %vm192, %vm199
        %v201 = vlaneseq
        %v202 = vshrl.u32 %v201, 7
        %v203 = vadd.s32 %v202, 8
        %s204 = sld [smem:[#allocation5]]
        %s205 = sld [smem:[#allocation6]]
        %v206 = vstv %s204
        %vm207 = vcmp.ge.s32.totalorder %v202, %v206
        %vm208 = vcmp.ge.s32.totalorder %v203, %v206
        %v209 = vstv %s205
        %vm210 = vcmp.lt.s32.totalorder %v202, %v209
        %vm211 = vcmp.lt.s32.totalorder %v203, %v209
        %vm212 = vmand %vm207, %vm210
        %vm213 = vmand %vm208, %vm211
        %s214 = sld [smem:[#allocation5 + $0x1]]
        %s215 = sld [smem:[#allocation6 + $0x1]]
        %v216 = vstv %s214
        %vm217 = vcmp.ge.s32.totalorder %v202, %v216
        %vm218 = vcmp.ge.s32.totalorder %v203, %v216
        %v219 = vstv %s215
        %vm220 = vcmp.lt.s32.totalorder %v202, %v219
        %vm221 = vcmp.lt.s32.totalorder %v203, %v219
        %vm222 = vmand %vm217, %vm220
        %vm223 = vmand %vm218, %vm221
        %vm224 = vmor %vm212, %vm222
        %vm225 = vmor %vm213, %vm223
        %v226 = vsel %vm200, 1, 0
        %vm227 = vcmp.eq.s32.totalorder %v226, 1
        %v228 = vsel %vm224, 1, 0
        %v229 = vsel %vm225, 1, 0
        %vm230 = vcmp.eq.s32.totalorder %v228, 1
        %vm231 = vcmp.eq.s32.totalorder %v229, 1
        %vm232 = vmor %vm227, %vm230
        %vm233 = vmor %vm227, %vm231
        %v234 = vld [vmem:[%s161] sm:$0xff]
        %v235 = vld [vmem:[%s161 + $0x8] sm:$0xff]
        %v236 = vsel %vm232, 0.0, %v234
        %v237 = vsel %vm233, 0.0, %v235
        %238 = vst [vmem:[%s180] sm:$0xff] %v236
        %239 = vst [vmem:[%s180 + $0x8] sm:$0xff] %v237
        %s240 = sand.u32 %s95, 1
        %s241 = scalar_lea.sflag [#allocation9], %s240
        %s242 = sand.u32 %s95, 1
        %s243 = smul.addr %s242, 16
        %s244 = scalar_lea.vmem [#allocation10], %s243
        // Predicated region
        $region29: #{tpu_custom_call.1} parent=23 // pred_check
          %p245 = pneg %p105
        $region30: #{tpu_custom_call.1} parent=23 // pred_check_branch
          %247 = sbr.rel (%p245) target = $region32
        $region31: #{tpu_custom_call.1} parent=23 // pred_region
          %249 = vsyncadd %s241, 0
          %s250 = smul.addr %s49, 2
          %s251 = sadd.s32 %s50, %s250
          %s252 = smul.addr %s251, 8
          %s253 = scalar_lea.hbm %s5, %s252
          %s254 = sshll.u32 %s244, 4
          %s255 = int_to_ptr.vmem [resolvable:$true] %s254
          %s256 = sshll.u32 %s253, 4
          %s257 = int_to_ptr.hbm [resolvable:$true] %s256
          %262 = dma.vmem_to_hbm [thread:$0]  %s255, 256, %s257, %s241, 128, 128, 8
        $region32: #{tpu_custom_call.1} parent=23 // pred_fallthru
          _
      $region24: #{tpu_custom_call.1} parent=5 // pred_fallthru
        _
      %p263 = scmp.le.s32.totalorder 2, %s40
      // Predicated region
      $region33: #{tpu_custom_call.1} parent=5 // pred_check
        %p264 = pneg %p263
      $region34: #{tpu_custom_call.1} parent=5 // pred_check_branch
        %266 = sbr.rel (%p264) target = $region36
      $region35: #{tpu_custom_call.1} parent=5 // pred_region
        %s267 = ssub.s32 %s40, 2
        // Predicated region
        $region37: #{tpu_custom_call.1} parent=35 // pred_check
          %p268 = pneg %p111
        $region38: #{tpu_custom_call.1} parent=35 // pred_check_branch
          %270 = sbr.rel (%p268) target = $region40
        $region39: #{tpu_custom_call.1} parent=35 // pred_region
          %s271 = sand.u32 %s96, 1
          %s272 = scalar_lea.sflag [#allocation9], %s271
          %s273 = sand.u32 %s96, 1
          %s274 = smul.addr %s273, 16
          %s275 = scalar_lea.vmem [#allocation10], %s274
          %277 = dma.done %s272, 256
        $region40: #{tpu_custom_call.1} parent=35 // pred_fallthru
          _
      $region36: #{tpu_custom_call.1} parent=5 // pred_fallthru
        _
    $region6: #{tpu_custom_call.1} parent=1 // loop_footer
      %s44 = sadd.s32 1, %s40
    $region7: #{tpu_custom_call.1} parent=1 // loop_footer_branch
      %39 = sbr.rel target = $region3
    $region8: #{tpu_custom_call.1} parent=1 // loop_exit
      _
    %278 = vsyncpa [#allocation8], 1
    %s279 = scalar_lea.sflag [#allocation8], 1
    %280 = vsyncpa %s279, 1
    %281 = vsyncpa [#allocation9], 1
    %s282 = scalar_lea.sflag [#allocation9], 1
    %283 = vsyncpa %s282, 1

</llo_original>
